<compile_context>
chip_gen: v7x
topology: tpu7x:2x2x1
jax: 0.10.0
libtpu: 0.0.40
codegen_flags: <defaults>
</compile_context>

<pallas_src>
import jax
import jax.numpy as jnp
from jax import lax
from jax.experimental import pallas as pl
from jax.experimental.pallas import tpu as pltpu


def lstm_fc_kernel(x_ref, wih_ref, whh_ref, b_ref, fcw_ref, fcb_ref, out_ref, gx_ref):
    """Whole LSTM recurrence + final FC in one kernel.

    x_ref  : (S*Bpad, E)   bf16  embedded sequence, time-major rows (row = t*Bpad + b)
    wih_ref: (E, 4H)       bf16  input-to-hidden weights (transposed, gate order i,f,g,o)
    whh_ref: (H, 4H)       bf16  hidden-to-hidden weights (transposed)
    b_ref  : (1, 4H)       f32   b_ih + b_hh
    fcw_ref: (1, 2H)       f32   final linear weight row, [w_for_h | w_for_c]
    fcb_ref: (1, 1)        f32   final linear bias
    out_ref: (Bpad, 1)     f32   logits (rows >= B are batch padding, sliced in wrapper)
    gx_ref : (S, Bpad, 4H) f32   VMEM scratch: staged input projection
    """
    Bp = out_ref.shape[0]
    H = whh_ref.shape[0]
    S = gx_ref.shape[0]

    # --- Hoisted input projection: one big bf16 MXU matmul, f32 accumulate, bias
    #     folded in. Staged to VMEM as (S, Bpad, 4H) so each step reads a whole
    #     8-sublane-aligned tile (Bpad multiple of 8, 4H multiple of 128 lanes).
    gx = jnp.dot(x_ref[...], wih_ref[...],
                 preferred_element_type=jnp.float32) + b_ref[...]        # (S*Bp, 4H)
    gx_ref[...] = gx.reshape(S, Bp, 4 * H)

    # Recurrent weight resident in vregs across the loop (bf16 halves the vreg
    # footprint and the per-step MXU operand push).
    # TODO(synk): holding W_hh staged in the MXU weight registers across steps
    # (pltpu.matmul_push_rhs / matmul_acc_lhs / matmul_pop) and v7x MRB accumulation
    # would further shorten the per-step chain, but the explicit-MXU path is
    # lowering-fragile at K=H=32, so jnp.dot is kept for robustness.
    whh = whh_ref[...]                                                   # (H, 4H) bf16
    fcw = fcw_ref[...]                                                   # (1, 2H) f32

    def step(t, carry):
        h, c = carry
        # Serial chain per step: one (Bp,H)x(H,4H) bf16 MXU matmul + one VPU add,
        # two full-width EUP activations, and the VPU cell update.
        gates = gx_ref[t] + jnp.dot(h.astype(whh.dtype), whh,
                                    preferred_element_type=jnp.float32)  # (Bp, 4H)
        sig = jax.nn.sigmoid(gates)                                      # (Bp, 4H)
        th = jnp.tanh(gates)                                             # (Bp, 4H)
        i_g = sig[:, 0 * H:1 * H]
        f_g = sig[:, 1 * H:2 * H]
        g_g = th[:, 2 * H:3 * H]
        o_g = sig[:, 3 * H:4 * H]
        c = f_g * c + i_g * g_g
        h = o_g * jnp.tanh(c)
        return (h, c)

    h0 = jnp.zeros((Bp, H), jnp.float32)
    c0 = jnp.zeros((Bp, H), jnp.float32)
    # Unrolled for LLO visibility at small S; fori_loop bounds live ranges if S grows.
    h, c = lax.fori_loop(0, S, step, (h0, c0), unroll=True)

    # --- Final FC as VPU multiply + XLU lane reduce (no concat, no N=1 MXU pass).
    # einops.rearrange([hn, cn], 'b d n h -> n (b d h)') with num_layers=1,
    # unidirectional  ==  concat([h_final, c_final], axis=-1) per batch row, so
    # logit = h . w[:H] + c . w[H:] + b.
    out_ref[...] = (jnp.sum(h * fcw[:, :H], axis=1, keepdims=True)
                    + jnp.sum(c * fcw[:, H:], axis=1, keepdims=True)
                    + fcb_ref[...])


def lstm_forward(tokens, emb_table, w_ih, w_hh, b_ih, b_hh, fc_w, fc_b):
    # TODO(synk): embedding gather kept as an XLA jnp.take; an in-kernel
    # scalar-prefetch gather is possible but not worth the lowering risk here.
    x_emb = jnp.take(emb_table, tokens, axis=0).astype(jnp.float32)      # (S, B, E)
    S, B, E = x_emb.shape
    H = w_hh.shape[1]

    # Pad batch rows to the 8-sublane boundary so per-step tiles are vreg-aligned.
    SUB = 8
    Bpad = ((B + SUB - 1) // SUB) * SUB
    x_pad = jnp.pad(x_emb, ((0, 0), (0, Bpad - B), (0, 0)))              # (S, Bpad, E)

    # MXU operands in bf16 (f32 accumulation in-kernel); everything else stays f32.
    x2d = x_pad.reshape(S * Bpad, E).astype(jnp.bfloat16)                # row = t*Bpad + b
    wih_t = w_ih.T.astype(jnp.bfloat16)                                  # (E, 4H)
    whh_t = w_hh.T.astype(jnp.bfloat16)                                  # (H, 4H)
    bias = (b_ih + b_hh).reshape(1, 4 * H).astype(jnp.float32)
    fcw = fc_w.reshape(1, 2 * H).astype(jnp.float32)                     # [w_h | w_c]
    fcb = fc_b.reshape(1, 1).astype(jnp.float32)

    vmem = pl.BlockSpec(memory_space=pltpu.MemorySpace.VMEM)
    # TODO(synk): at production S*B, switch to a time grid marked "arbitrary" with
    # h/c carried in VMEM scratch (pipelined gate blocks, explicit vmem_limit_bytes)
    # and a leading "parallel" batch axis for v7x's two TensorCores; at S=8, B=2 a
    # single grid-less invocation is the latency-optimal shape.
    out = pl.pallas_call(
        lstm_fc_kernel,
        out_shape=jax.ShapeDtypeStruct((Bpad, 1), jnp.float32),
        in_specs=[vmem] * 6,
        out_specs=vmem,
        scratch_shapes=[pltpu.VMEM((S, Bpad, 4 * H), jnp.float32)],
    )(x2d, wih_t, whh_t, bias, fcw, fcb)
    return out[:B]


def reference_forward(tokens, emb_table, w_ih, w_hh, b_ih, b_hh, fc_w, fc_b,
                      matmul_dtype=jnp.float32):
    """Pure-JAX reference matching torch.nn.LSTM semantics (gate order i,f,g,o).

    matmul_dtype=jnp.bfloat16 mirrors the kernel's bf16 MXU operands (f32 accumulate)
    for a tight numerical check; jnp.float32 gives the exact PyTorch-f32 math.
    """
    x = jnp.take(emb_table, tokens, axis=0).astype(jnp.float32)
    H = w_hh.shape[1]
    B = tokens.shape[1]
    wih_t = w_ih.T.astype(matmul_dtype)
    whh_t = w_hh.T.astype(matmul_dtype)
    bias = (b_ih + b_hh)[None, :]

    def cell(carry, x_t):
        h, c = carry
        gates = (jnp.dot(x_t.astype(matmul_dtype), wih_t,
                         preferred_element_type=jnp.float32)
                 + jnp.dot(h.astype(matmul_dtype), whh_t,
                           preferred_element_type=jnp.float32)
                 + bias)
        i = jax.nn.sigmoid(gates[:, :H])
        f = jax.nn.sigmoid(gates[:, H:2 * H])
        g = jnp.tanh(gates[:, 2 * H:3 * H])
        o = jax.nn.sigmoid(gates[:, 3 * H:])
        c = f * c + i * g
        h = o * jnp.tanh(c)
        return (h, c), None

    init = (jnp.zeros((B, H), jnp.float32), jnp.zeros((B, H), jnp.float32))
    (h, c), _ = lax.scan(cell, init, x)
    feat = jnp.concatenate([h, c], axis=1)
    return feat @ fc_w.T + fc_b


if __name__ == "__main__":
    # Small deterministic configuration.
    num_emb, emb_dim, hidden_dim = 32, 16, 32
    seq_len, batch = 8, 2

    key = jax.random.PRNGKey(0)
    k_tok, k_emb, k_wih, k_whh, k_bih, k_bhh, k_fcw, k_fcb = jax.random.split(key, 8)

    # Parameters (deterministic init; orthogonal LSTM weights, kaiming-like FC,
    # mirroring the module's init_weights intent).
    orth = jax.nn.initializers.orthogonal()
    emb_table = jax.random.normal(k_emb, (num_emb, emb_dim), jnp.float32)
    w_ih = orth(k_wih, (4 * hidden_dim, emb_dim), jnp.float32)
    w_hh = orth(k_whh, (4 * hidden_dim, hidden_dim), jnp.float32)
    b_ih = 0.01 * jax.random.normal(k_bih, (4 * hidden_dim,), jnp.float32)
    b_hh = 0.01 * jax.random.normal(k_bhh, (4 * hidden_dim,), jnp.float32)
    fc_in = 2 * hidden_dim  # lstm_out_dim = 2 * num_layers * hidden_dim
    fc_w = jax.random.normal(k_fcw, (1, fc_in), jnp.float32) * jnp.sqrt(2.0 / fc_in)
    fc_b = jnp.zeros((1,), jnp.float32)

    # Input token ids: (seq, batch) — batch_first=False.
    tokens = jax.random.randint(k_tok, (seq_len, batch), 0, num_emb, jnp.int32)

    logits = lstm_forward(tokens, emb_table, w_ih, w_hh, b_ih, b_hh, fc_w, fc_b)
    jax.block_until_ready(logits)
    assert logits.shape == (batch, 1), logits.shape

    # Tight check vs. a reference that mirrors the kernel's bf16 MXU operands.
    ref_bf16 = reference_forward(tokens, emb_table, w_ih, w_hh, b_ih, b_hh,
                                 fc_w, fc_b, matmul_dtype=jnp.bfloat16)
    assert jnp.allclose(logits, ref_bf16, atol=2e-3, rtol=2e-3), (logits, ref_bf16)

    # Loose semantic sanity check vs. the exact f32 PyTorch-semantics reference
    # (bf16 MXU-operand rounding is the only source of deviation).
    ref_f32 = reference_forward(tokens, emb_table, w_ih, w_hh, b_ih, b_hh,
                                fc_w, fc_b, matmul_dtype=jnp.float32)
    assert jnp.allclose(logits, ref_f32, atol=5e-2, rtol=5e-2), (logits, ref_f32)

    print("KERNEL_OK")
</pallas_src>

<mosaic_0001>
module attributes {stable_mosaic.version = 11 : i64} {
  func.func @lstm_fc_kernel(%arg0: memref<64x16xbf16, #tpu.memory_space<vmem>>, %arg1: memref<16x128xbf16, #tpu.memory_space<vmem>>, %arg2: memref<32x128xbf16, #tpu.memory_space<vmem>>, %arg3: memref<1x128xf32, #tpu.memory_space<vmem>>, %arg4: memref<1x64xf32, #tpu.memory_space<vmem>>, %arg5: memref<1x1xf32, #tpu.memory_space<vmem>>, %arg6: memref<8x1xf32, #tpu.memory_space<vmem>>, %arg7: memref<8x8x128xf32, #tpu.memory_space<vmem>>) attributes {dimension_semantics = [], scalar_prefetch = 0 : i64, scratch_operands = 1 : i64, tpu.core_type = #tpu.core_type<tc>} {
    %c0 = arith.constant 0 : index
    %c0_0 = arith.constant 0 : index
    %0 = vector.load %arg0[%c0, %c0_0] : memref<64x16xbf16, #tpu.memory_space<vmem>>, vector<64x16xbf16>
    %c0_1 = arith.constant 0 : index
    %c0_2 = arith.constant 0 : index
    %1 = vector.load %arg1[%c0_1, %c0_2] : memref<16x128xbf16, #tpu.memory_space<vmem>>, vector<16x128xbf16>
    %cst = arith.constant dense<0.000000e+00> : vector<64x128xf32>
    %2 = tpu.matmul %0, %1, %cst {dimension_numbers = #tpu.dot_dimension_numbers<[1], [0], [0], [1], [0, 0, 1, 1], [], []>} : vector<64x16xbf16>, vector<16x128xbf16>, vector<64x128xf32> -> vector<64x128xf32>
    %c0_3 = arith.constant 0 : index
    %c0_4 = arith.constant 0 : index
    %3 = vector.load %arg3[%c0_3, %c0_4] : memref<1x128xf32, #tpu.memory_space<vmem>>, vector<1x128xf32>
    %4 = vector.broadcast %3 : vector<1x128xf32> to vector<64x128xf32>
    %5 = arith.addf %2, %4 : vector<64x128xf32>
    %6 = vector.shape_cast %5 : vector<64x128xf32> to vector<8x8x128xf32>
    %c0_5 = arith.constant 0 : index
    %c0_6 = arith.constant 0 : index
    %c0_7 = arith.constant 0 : index
    %7 = vector.load %arg7[%c0_5, %c0_6, %c0_7] : memref<8x8x128xf32, #tpu.memory_space<vmem>>, vector<8x8x128xf32>
    tpu.vector_store %arg7[%c0_5, %c0_6, %c0_7], %6 {strides = array<i32>} : memref<8x8x128xf32, #tpu.memory_space<vmem>>, vector<8x8x128xf32>,
    %c0_8 = arith.constant 0 : index
    %c0_9 = arith.constant 0 : index
    %8 = vector.load %arg2[%c0_8, %c0_9] : memref<32x128xbf16, #tpu.memory_space<vmem>>, vector<32x128xbf16>
    %c0_10 = arith.constant 0 : index
    %c0_11 = arith.constant 0 : index
    %9 = vector.load %arg4[%c0_10, %c0_11] : memref<1x64xf32, #tpu.memory_space<vmem>>, vector<1x64xf32>
    %cst_12 = arith.constant 0.000000e+00 : f32
    %10 = vector.broadcast %cst_12 : f32 to vector<8x32xf32>
    %cst_13 = arith.constant 0.000000e+00 : f32
    %11 = vector.broadcast %cst_13 : f32 to vector<8x32xf32>
    %c0_i32 = arith.constant 0 : i32
    %12 = arith.index_cast %c0_i32 : i32 to index
    %c0_14 = arith.constant 0 : index
    %c0_15 = arith.constant 0 : index
    %13 = vector.load %arg7[%12, %c0_14, %c0_15] : memref<8x8x128xf32, #tpu.memory_space<vmem>>, vector<1x8x128xf32>
    %14 = vector.shape_cast %13 : vector<1x8x128xf32> to vector<8x128xf32>
    %15 = arith.truncf %10 : vector<8x32xf32> to vector<8x32xbf16>
    %cst_16 = arith.constant dense<0.000000e+00> : vector<8x128xf32>
    %16 = tpu.matmul %15, %8, %cst_16 {dimension_numbers = #tpu.dot_dimension_numbers<[1], [0], [0], [1], [0, 0, 1, 1], [], []>} : vector<8x32xbf16>, vector<32x128xbf16>, vector<8x128xf32> -> vector<8x128xf32>
    %17 = arith.addf %14, %16 : vector<8x128xf32>
    %18 = arith.negf %17 : vector<8x128xf32>
    %19 = math.exp %18 : vector<8x128xf32>
    %cst_17 = arith.constant 1.000000e+00 : f32
    %20 = vector.broadcast %cst_17 : f32 to vector<8x128xf32>
    %21 = arith.addf %20, %19 : vector<8x128xf32>
    %22 = arith.divf %20, %21 : vector<8x128xf32>
    %23 = math.tanh %17 : vector<8x128xf32>
    %24 = vector.extract_strided_slice %22 {offsets = [0, 0], sizes = [8, 32], strides = [1, 1]} : vector<8x128xf32> to vector<8x32xf32>
    %25 = vector.extract_strided_slice %22 {offsets = [0, 32], sizes = [8, 32], strides = [1, 1]} : vector<8x128xf32> to vector<8x32xf32>
    %26 = vector.extract_strided_slice %23 {offsets = [0, 64], sizes = [8, 32], strides = [1, 1]} : vector<8x128xf32> to vector<8x32xf32>
    %27 = vector.extract_strided_slice %22 {offsets = [0, 96], sizes = [8, 32], strides = [1, 1]} : vector<8x128xf32> to vector<8x32xf32>
    %28 = arith.mulf %25, %11 : vector<8x32xf32>
    %29 = arith.mulf %24, %26 : vector<8x32xf32>
    %30 = arith.addf %28, %29 : vector<8x32xf32>
    %31 = math.tanh %30 : vector<8x32xf32>
    %32 = arith.mulf %27, %31 : vector<8x32xf32>
    %c1_i32 = arith.constant 1 : i32
    %33 = arith.index_cast %c1_i32 : i32 to index
    %c0_18 = arith.constant 0 : index
    %c0_19 = arith.constant 0 : index
    %34 = vector.load %arg7[%33, %c0_18, %c0_19] : memref<8x8x128xf32, #tpu.memory_space<vmem>>, vector<1x8x128xf32>
    %35 = vector.shape_cast %34 : vector<1x8x128xf32> to vector<8x128xf32>
    %36 = arith.truncf %32 : vector<8x32xf32> to vector<8x32xbf16>
    %cst_20 = arith.constant dense<0.000000e+00> : vector<8x128xf32>
    %37 = tpu.matmul %36, %8, %cst_20 {dimension_numbers = #tpu.dot_dimension_numbers<[1], [0], [0], [1], [0, 0, 1, 1], [], []>} : vector<8x32xbf16>, vector<32x128xbf16>, vector<8x128xf32> -> vector<8x128xf32>
    %38 = arith.addf %35, %37 : vector<8x128xf32>
    %39 = arith.negf %38 : vector<8x128xf32>
    %40 = math.exp %39 : vector<8x128xf32>
    %cst_21 = arith.constant 1.000000e+00 : f32
    %41 = vector.broadcast %cst_21 : f32 to vector<8x128xf32>
    %42 = arith.addf %41, %40 : vector<8x128xf32>
    %43 = arith.divf %41, %42 : vector<8x128xf32>
    %44 = math.tanh %38 : vector<8x128xf32>
    %45 = vector.extract_strided_slice %43 {offsets = [0, 0], sizes = [8, 32], strides = [1, 1]} : vector<8x128xf32> to vector<8x32xf32>
    %46 = vector.extract_strided_slice %43 {offsets = [0, 32], sizes = [8, 32], strides = [1, 1]} : vector<8x128xf32> to vector<8x32xf32>
    %47 = vector.extract_strided_slice %44 {offsets = [0, 64], sizes = [8, 32], strides = [1, 1]} : vector<8x128xf32> to vector<8x32xf32>
    %48 = vector.extract_strided_slice %43 {offsets = [0, 96], sizes = [8, 32], strides = [1, 1]} : vector<8x128xf32> to vector<8x32xf32>
    %49 = arith.mulf %46, %30 : vector<8x32xf32>
    %50 = arith.mulf %45, %47 : vector<8x32xf32>
    %51 = arith.addf %49, %50 : vector<8x32xf32>
    %52 = math.tanh %51 : vector<8x32xf32>
    %53 = arith.mulf %48, %52 : vector<8x32xf32>
    %c2_i32 = arith.constant 2 : i32
    %54 = arith.index_cast %c2_i32 : i32 to index
    %c0_22 = arith.constant 0 : index
    %c0_23 = arith.constant 0 : index
    %55 = vector.load %arg7[%54, %c0_22, %c0_23] : memref<8x8x128xf32, #tpu.memory_space<vmem>>, vector<1x8x128xf32>
    %56 = vector.shape_cast %55 : vector<1x8x128xf32> to vector<8x128xf32>
    %57 = arith.truncf %53 : vector<8x32xf32> to vector<8x32xbf16>
    %cst_24 = arith.constant dense<0.000000e+00> : vector<8x128xf32>
    %58 = tpu.matmul %57, %8, %cst_24 {dimension_numbers = #tpu.dot_dimension_numbers<[1], [0], [0], [1], [0, 0, 1, 1], [], []>} : vector<8x32xbf16>, vector<32x128xbf16>, vector<8x128xf32> -> vector<8x128xf32>
    %59 = arith.addf %56, %58 : vector<8x128xf32>
    %60 = arith.negf %59 : vector<8x128xf32>
    %61 = math.exp %60 : vector<8x128xf32>
    %cst_25 = arith.constant 1.000000e+00 : f32
    %62 = vector.broadcast %cst_25 : f32 to vector<8x128xf32>
    %63 = arith.addf %62, %61 : vector<8x128xf32>
    %64 = arith.divf %62, %63 : vector<8x128xf32>
    %65 = math.tanh %59 : vector<8x128xf32>
    %66 = vector.extract_strided_slice %64 {offsets = [0, 0], sizes = [8, 32], strides = [1, 1]} : vector<8x128xf32> to vector<8x32xf32>
    %67 = vector.extract_strided_slice %64 {offsets = [0, 32], sizes = [8, 32], strides = [1, 1]} : vector<8x128xf32> to vector<8x32xf32>
    %68 = vector.extract_strided_slice %65 {offsets = [0, 64], sizes = [8, 32], strides = [1, 1]} : vector<8x128xf32> to vector<8x32xf32>
    %69 = vector.extract_strided_slice %64 {offsets = [0, 96], sizes = [8, 32], strides = [1, 1]} : vector<8x128xf32> to vector<8x32xf32>
    %70 = arith.mulf %67, %51 : vector<8x32xf32>
    %71 = arith.mulf %66, %68 : vector<8x32xf32>
    %72 = arith.addf %70, %71 : vector<8x32xf32>
    %73 = math.tanh %72 : vector<8x32xf32>
    %74 = arith.mulf %69, %73 : vector<8x32xf32>
    %c3_i32 = arith.constant 3 : i32
    %75 = arith.index_cast %c3_i32 : i32 to index
    %c0_26 = arith.constant 0 : index
    %c0_27 = arith.constant 0 : index
    %76 = vector.load %arg7[%75, %c0_26, %c0_27] : memref<8x8x128xf32, #tpu.memory_space<vmem>>, vector<1x8x128xf32>
    %77 = vector.shape_cast %76 : vector<1x8x128xf32> to vector<8x128xf32>
    %78 = arith.truncf %74 : vector<8x32xf32> to vector<8x32xbf16>
    %cst_28 = arith.constant dense<0.000000e+00> : vector<8x128xf32>
    %79 = tpu.matmul %78, %8, %cst_28 {dimension_numbers = #tpu.dot_dimension_numbers<[1], [0], [0], [1], [0, 0, 1, 1], [], []>} : vector<8x32xbf16>, vector<32x128xbf16>, vector<8x128xf32> -> vector<8x128xf32>
    %80 = arith.addf %77, %79 : vector<8x128xf32>
    %81 = arith.negf %80 : vector<8x128xf32>
    %82 = math.exp %81 : vector<8x128xf32>
    %cst_29 = arith.constant 1.000000e+00 : f32
    %83 = vector.broadcast %cst_29 : f32 to vector<8x128xf32>
    %84 = arith.addf %83, %82 : vector<8x128xf32>
    %85 = arith.divf %83, %84 : vector<8x128xf32>
    %86 = math.tanh %80 : vector<8x128xf32>
    %87 = vector.extract_strided_slice %85 {offsets = [0, 0], sizes = [8, 32], strides = [1, 1]} : vector<8x128xf32> to vector<8x32xf32>
    %88 = vector.extract_strided_slice %85 {offsets = [0, 32], sizes = [8, 32], strides = [1, 1]} : vector<8x128xf32> to vector<8x32xf32>
    %89 = vector.extract_strided_slice %86 {offsets = [0, 64], sizes = [8, 32], strides = [1, 1]} : vector<8x128xf32> to vector<8x32xf32>
    %90 = vector.extract_strided_slice %85 {offsets = [0, 96], sizes = [8, 32], strides = [1, 1]} : vector<8x128xf32> to vector<8x32xf32>
    %91 = arith.mulf %88, %72 : vector<8x32xf32>
    %92 = arith.mulf %87, %89 : vector<8x32xf32>
    %93 = arith.addf %91, %92 : vector<8x32xf32>
    %94 = math.tanh %93 : vector<8x32xf32>
    %95 = arith.mulf %90, %94 : vector<8x32xf32>
    %c4_i32 = arith.constant 4 : i32
    %96 = arith.index_cast %c4_i32 : i32 to index
    %c0_30 = arith.constant 0 : index
    %c0_31 = arith.constant 0 : index
    %97 = vector.load %arg7[%96, %c0_30, %c0_31] : memref<8x8x128xf32, #tpu.memory_space<vmem>>, vector<1x8x128xf32>
    %98 = vector.shape_cast %97 : vector<1x8x128xf32> to vector<8x128xf32>
    %99 = arith.truncf %95 : vector<8x32xf32> to vector<8x32xbf16>
    %cst_32 = arith.constant dense<0.000000e+00> : vector<8x128xf32>
    %100 = tpu.matmul %99, %8, %cst_32 {dimension_numbers = #tpu.dot_dimension_numbers<[1], [0], [0], [1], [0, 0, 1, 1], [], []>} : vector<8x32xbf16>, vector<32x128xbf16>, vector<8x128xf32> -> vector<8x128xf32>
    %101 = arith.addf %98, %100 : vector<8x128xf32>
    %102 = arith.negf %101 : vector<8x128xf32>
    %103 = math.exp %102 : vector<8x128xf32>
    %cst_33 = arith.constant 1.000000e+00 : f32
    %104 = vector.broadcast %cst_33 : f32 to vector<8x128xf32>
    %105 = arith.addf %104, %103 : vector<8x128xf32>
    %106 = arith.divf %104, %105 : vector<8x128xf32>
    %107 = math.tanh %101 : vector<8x128xf32>
    %108 = vector.extract_strided_slice %106 {offsets = [0, 0], sizes = [8, 32], strides = [1, 1]} : vector<8x128xf32> to vector<8x32xf32>
    %109 = vector.extract_strided_slice %106 {offsets = [0, 32], sizes = [8, 32], strides = [1, 1]} : vector<8x128xf32> to vector<8x32xf32>
    %110 = vector.extract_strided_slice %107 {offsets = [0, 64], sizes = [8, 32], strides = [1, 1]} : vector<8x128xf32> to vector<8x32xf32>
    %111 = vector.extract_strided_slice %106 {offsets = [0, 96], sizes = [8, 32], strides = [1, 1]} : vector<8x128xf32> to vector<8x32xf32>
    %112 = arith.mulf %109, %93 : vector<8x32xf32>
    %113 = arith.mulf %108, %110 : vector<8x32xf32>
    %114 = arith.addf %112, %113 : vector<8x32xf32>
    %115 = math.tanh %114 : vector<8x32xf32>
    %116 = arith.mulf %111, %115 : vector<8x32xf32>
    %c5_i32 = arith.constant 5 : i32
    %117 = arith.index_cast %c5_i32 : i32 to index
    %c0_34 = arith.constant 0 : index
    %c0_35 = arith.constant 0 : index
    %118 = vector.load %arg7[%117, %c0_34, %c0_35] : memref<8x8x128xf32, #tpu.memory_space<vmem>>, vector<1x8x128xf32>
    %119 = vector.shape_cast %118 : vector<1x8x128xf32> to vector<8x128xf32>
    %120 = arith.truncf %116 : vector<8x32xf32> to vector<8x32xbf16>
    %cst_36 = arith.constant dense<0.000000e+00> : vector<8x128xf32>
    %121 = tpu.matmul %120, %8, %cst_36 {dimension_numbers = #tpu.dot_dimension_numbers<[1], [0], [0], [1], [0, 0, 1, 1], [], []>} : vector<8x32xbf16>, vector<32x128xbf16>, vector<8x128xf32> -> vector<8x128xf32>
    %122 = arith.addf %119, %121 : vector<8x128xf32>
    %123 = arith.negf %122 : vector<8x128xf32>
    %124 = math.exp %123 : vector<8x128xf32>
    %cst_37 = arith.constant 1.000000e+00 : f32
    %125 = vector.broadcast %cst_37 : f32 to vector<8x128xf32>
    %126 = arith.addf %125, %124 : vector<8x128xf32>
    %127 = arith.divf %125, %126 : vector<8x128xf32>
    %128 = math.tanh %122 : vector<8x128xf32>
    %129 = vector.extract_strided_slice %127 {offsets = [0, 0], sizes = [8, 32], strides = [1, 1]} : vector<8x128xf32> to vector<8x32xf32>
    %130 = vector.extract_strided_slice %127 {offsets = [0, 32], sizes = [8, 32], strides = [1, 1]} : vector<8x128xf32> to vector<8x32xf32>
    %131 = vector.extract_strided_slice %128 {offsets = [0, 64], sizes = [8, 32], strides = [1, 1]} : vector<8x128xf32> to vector<8x32xf32>
    %132 = vector.extract_strided_slice %127 {offsets = [0, 96], sizes = [8, 32], strides = [1, 1]} : vector<8x128xf32> to vector<8x32xf32>
    %133 = arith.mulf %130, %114 : vector<8x32xf32>
    %134 = arith.mulf %129, %131 : vector<8x32xf32>
    %135 = arith.addf %133, %134 : vector<8x32xf32>
    %136 = math.tanh %135 : vector<8x32xf32>
    %137 = arith.mulf %132, %136 : vector<8x32xf32>
    %c6_i32 = arith.constant 6 : i32
    %138 = arith.index_cast %c6_i32 : i32 to index
    %c0_38 = arith.constant 0 : index
    %c0_39 = arith.constant 0 : index
    %139 = vector.load %arg7[%138, %c0_38, %c0_39] : memref<8x8x128xf32, #tpu.memory_space<vmem>>, vector<1x8x128xf32>
    %140 = vector.shape_cast %139 : vector<1x8x128xf32> to vector<8x128xf32>
    %141 = arith.truncf %137 : vector<8x32xf32> to vector<8x32xbf16>
    %cst_40 = arith.constant dense<0.000000e+00> : vector<8x128xf32>
    %142 = tpu.matmul %141, %8, %cst_40 {dimension_numbers = #tpu.dot_dimension_numbers<[1], [0], [0], [1], [0, 0, 1, 1], [], []>} : vector<8x32xbf16>, vector<32x128xbf16>, vector<8x128xf32> -> vector<8x128xf32>
    %143 = arith.addf %140, %142 : vector<8x128xf32>
    %144 = arith.negf %143 : vector<8x128xf32>
    %145 = math.exp %144 : vector<8x128xf32>
    %cst_41 = arith.constant 1.000000e+00 : f32
    %146 = vector.broadcast %cst_41 : f32 to vector<8x128xf32>
    %147 = arith.addf %146, %145 : vector<8x128xf32>
    %148 = arith.divf %146, %147 : vector<8x128xf32>
    %149 = math.tanh %143 : vector<8x128xf32>
    %150 = vector.extract_strided_slice %148 {offsets = [0, 0], sizes = [8, 32], strides = [1, 1]} : vector<8x128xf32> to vector<8x32xf32>
    %151 = vector.extract_strided_slice %148 {offsets = [0, 32], sizes = [8, 32], strides = [1, 1]} : vector<8x128xf32> to vector<8x32xf32>
    %152 = vector.extract_strided_slice %149 {offsets = [0, 64], sizes = [8, 32], strides = [1, 1]} : vector<8x128xf32> to vector<8x32xf32>
    %153 = vector.extract_strided_slice %148 {offsets = [0, 96], sizes = [8, 32], strides = [1, 1]} : vector<8x128xf32> to vector<8x32xf32>
    %154 = arith.mulf %151, %135 : vector<8x32xf32>
    %155 = arith.mulf %150, %152 : vector<8x32xf32>
    %156 = arith.addf %154, %155 : vector<8x32xf32>
    %157 = math.tanh %156 : vector<8x32xf32>
    %158 = arith.mulf %153, %157 : vector<8x32xf32>
    %c7_i32 = arith.constant 7 : i32
    %159 = arith.index_cast %c7_i32 : i32 to index
    %c0_42 = arith.constant 0 : index
    %c0_43 = arith.constant 0 : index
    %160 = vector.load %arg7[%159, %c0_42, %c0_43] : memref<8x8x128xf32, #tpu.memory_space<vmem>>, vector<1x8x128xf32>
    %161 = vector.shape_cast %160 : vector<1x8x128xf32> to vector<8x128xf32>
    %162 = arith.truncf %158 : vector<8x32xf32> to vector<8x32xbf16>
    %cst_44 = arith.constant dense<0.000000e+00> : vector<8x128xf32>
    %163 = tpu.matmul %162, %8, %cst_44 {dimension_numbers = #tpu.dot_dimension_numbers<[1], [0], [0], [1], [0, 0, 1, 1], [], []>} : vector<8x32xbf16>, vector<32x128xbf16>, vector<8x128xf32> -> vector<8x128xf32>
    %164 = arith.addf %161, %163 : vector<8x128xf32>
    %165 = arith.negf %164 : vector<8x128xf32>
    %166 = math.exp %165 : vector<8x128xf32>
    %cst_45 = arith.constant 1.000000e+00 : f32
    %167 = vector.broadcast %cst_45 : f32 to vector<8x128xf32>
    %168 = arith.addf %167, %166 : vector<8x128xf32>
    %169 = arith.divf %167, %168 : vector<8x128xf32>
    %170 = math.tanh %164 : vector<8x128xf32>
    %171 = vector.extract_strided_slice %169 {offsets = [0, 0], sizes = [8, 32], strides = [1, 1]} : vector<8x128xf32> to vector<8x32xf32>
    %172 = vector.extract_strided_slice %169 {offsets = [0, 32], sizes = [8, 32], strides = [1, 1]} : vector<8x128xf32> to vector<8x32xf32>
    %173 = vector.extract_strided_slice %170 {offsets = [0, 64], sizes = [8, 32], strides = [1, 1]} : vector<8x128xf32> to vector<8x32xf32>
    %174 = vector.extract_strided_slice %169 {offsets = [0, 96], sizes = [8, 32], strides = [1, 1]} : vector<8x128xf32> to vector<8x32xf32>
    %175 = arith.mulf %172, %156 : vector<8x32xf32>
    %176 = arith.mulf %171, %173 : vector<8x32xf32>
    %177 = arith.addf %175, %176 : vector<8x32xf32>
    %178 = math.tanh %177 : vector<8x32xf32>
    %179 = arith.mulf %174, %178 : vector<8x32xf32>
    %c8_i32 = arith.constant 8 : i32
    %180 = vector.extract_strided_slice %9 {offsets = [0, 0], sizes = [1, 32], strides = [1, 1]} : vector<1x64xf32> to vector<1x32xf32>
    %181 = vector.broadcast %180 : vector<1x32xf32> to vector<8x32xf32>
    %182 = arith.mulf %179, %181 : vector<8x32xf32>
    %cst_46 = arith.constant dense<0.000000e+00> : vector<8xf32>
    %183 = vector.multi_reduction <add>, %182, %cst_46 [1] : vector<8x32xf32> to vector<8xf32>
    %184 = vector.shape_cast %183 : vector<8xf32> to vector<8x1xf32>
    %185 = vector.extract_strided_slice %9 {offsets = [0, 32], sizes = [1, 32], strides = [1, 1]} : vector<1x64xf32> to vector<1x32xf32>
    %186 = vector.broadcast %185 : vector<1x32xf32> to vector<8x32xf32>
    %187 = arith.mulf %177, %186 : vector<8x32xf32>
    %cst_47 = arith.constant dense<0.000000e+00> : vector<8xf32>
    %188 = vector.multi_reduction <add>, %187, %cst_47 [1] : vector<8x32xf32> to vector<8xf32>
    %189 = vector.shape_cast %188 : vector<8xf32> to vector<8x1xf32>
    %190 = arith.addf %184, %189 : vector<8x1xf32>
    %c0_48 = arith.constant 0 : index
    %c0_49 = arith.constant 0 : index
    %191 = vector.load %arg5[%c0_48, %c0_49] : memref<1x1xf32, #tpu.memory_space<vmem>>, vector<1x1xf32>
    %192 = vector.broadcast %191 : vector<1x1xf32> to vector<8x1xf32>
    %193 = arith.addf %190, %192 : vector<8x1xf32>
    %c0_50 = arith.constant 0 : index
    %c0_51 = arith.constant 0 : index
    %194 = vector.load %arg6[%c0_50, %c0_51] : memref<8x1xf32, #tpu.memory_space<vmem>>, vector<8x1xf32>
    tpu.vector_store %arg6[%c0_50, %c0_51], %193 {strides = array<i32>} : memref<8x1xf32, #tpu.memory_space<vmem>>, vector<8x1xf32>,
    return
  }
}

</mosaic_0001>

<llo_original>
// kernel: tpu_custom_call.1
$region0: #{tpu_custom_call.1}
  #allocation0 [shape = 'u32[]', space=smem, size = 0x4, offset = 0x4, fixed_abs, tag = 'smem constant byte address 0x4 - core index']
  #allocation1 [shape = 'u32[144,128]{1,0:T(1,128)}', space=vmem, size = 0x12000, scoped, tag = 'internal scratch']
  #allocation2 [shape = 'f32[8,8,128]{2,1,0:T(8,128)}', space=vmem, size = 0x8000, scoped, tag = 'scratch operand']
  #allocation3 [shape = 'f32[1,1]{1,0:T(1,128)S(1)}', space=vmem, size = 0x200, scoped, tag = 'scoped memory for tpu_custom_call.1']
  %s0 = inlined_call_operand.vmem [shape: bf16[64,16], index: 0, kind: input, shape index: {}]
  %s1 = inlined_call_operand.vmem [shape: bf16[16,128], index: 1, kind: input, shape index: {}]
  %s2 = inlined_call_operand.vmem [shape: bf16[32,128], index: 2, kind: input, shape index: {}]
  %s3 = inlined_call_operand.vmem [shape: f32[1,128], index: 3, kind: input, shape index: {}]
  %s4 = inlined_call_operand.vmem [shape: f32[1,64], index: 4, kind: input, shape index: {}]
  %s5 = inlined_call_operand.<no memory space> [shape: f32[1,1], index: 5, kind: input, shape index: {}]
  %s6 = inlined_call_operand.vmem [shape: f32[8,1], index: 6, kind: output, shape index: {}]
  %s7 = sld [smem:[#allocation0]]
  $region34: #{tpu_custom_call.1} parent=0
    _
  %s9 = ssub.s32 1, %s7
  %s10 = scalar_select 0, %s9, %s7
  %v11 = vstv %s5
  %12 = vst [vmem:[#allocation3] sm:$0x1] %v11
  // Predicated region
  $region2: #{tpu_custom_call.1} parent=0 // pred_check
    _
  $region3: #{tpu_custom_call.1} parent=0 // pred_check_branch
    %14 = sbr.rel (0) target = $region5
  $region4: #{tpu_custom_call.1} parent=0 // pred_region
    _
  $region5: #{tpu_custom_call.1} parent=0 // pred_fallthru
    _
  // Predicated region
  $region6: #{tpu_custom_call.1} parent=0 // pred_check
    _
  $region7: #{tpu_custom_call.1} parent=0 // pred_check_branch
    %16 = sbr.rel (0) target = $region9
  $region8: #{tpu_custom_call.1} parent=0 // pred_region
    _
  $region9: #{tpu_custom_call.1} parent=0 // pred_fallthru
    _
  // Predicated region
  $region10: #{tpu_custom_call.1} parent=0 // pred_check
    _
  $region11: #{tpu_custom_call.1} parent=0 // pred_check_branch
    %18 = sbr.rel (0) target = $region13
  $region12: #{tpu_custom_call.1} parent=0 // pred_region
    _
  $region13: #{tpu_custom_call.1} parent=0 // pred_fallthru
    _
  // Predicated region
  $region14: #{tpu_custom_call.1} parent=0 // pred_check
    _
  $region15: #{tpu_custom_call.1} parent=0 // pred_check_branch
    %20 = sbr.rel (0) target = $region17
  $region16: #{tpu_custom_call.1} parent=0 // pred_region
    _
  $region17: #{tpu_custom_call.1} parent=0 // pred_fallthru
    _
  // Predicated region
  $region18: #{tpu_custom_call.1} parent=0 // pred_check
    _
  $region19: #{tpu_custom_call.1} parent=0 // pred_check_branch
    %22 = sbr.rel (0) target = $region21
  $region20: #{tpu_custom_call.1} parent=0 // pred_region
    _
  $region21: #{tpu_custom_call.1} parent=0 // pred_fallthru
    _
  // Predicated region
  $region22: #{tpu_custom_call.1} parent=0 // pred_check
    _
  $region23: #{tpu_custom_call.1} parent=0 // pred_check_branch
    %24 = sbr.rel (0) target = $region25
  $region24: #{tpu_custom_call.1} parent=0 // pred_region
    _
  $region25: #{tpu_custom_call.1} parent=0 // pred_fallthru
    _
  %v26 = vld [vmem:[%s0] sm:$0xf]
  %v27 = vld [vmem:[%s0 + $0x4] sm:$0xf]
  %v28 = vld [vmem:[%s0 + $0x8] sm:$0xf]
  %v29 = vld [vmem:[%s0 + $0xc] sm:$0xf]
  %v30 = vld [vmem:[%s0 + $0x10] sm:$0xf]
  %v31 = vld [vmem:[%s0 + $0x14] sm:$0xf]
  %v32 = vld [vmem:[%s0 + $0x18] sm:$0xf]
  %v33 = vld [vmem:[%s0 + $0x1c] sm:$0xf]
  %v34 = vld [vmem:[%s1] sm:$0xf]
  %v35 = vld [vmem:[%s1 + $0x4] sm:$0xf]
  %v36 = vld [vmem:[%s3] sm:$0x1]
  %v38 = vlaneseq
  %v39 = vshrl.u32 %v38, 7
  %v40 = vsub.s32 0, %v39
  %v41 = vrot.slane %v36, %v40
  %v51 = vunpack.c.l.b16 %v26
  %v52 = vunpack.c.l.b16 %v27
  %v53 = vunpack.c.l.b16 %v28
  %v54 = vunpack.c.l.b16 %v29
  %v55 = vunpack.c.l.b16 %v30
  %v56 = vunpack.c.l.b16 %v31
  %v57 = vunpack.c.l.b16 %v32
  %v58 = vunpack.c.l.b16 %v33
  %v59 = vpack.c.b16 %v52, %v51
  %v60 = vpack.c.b16 %v54, %v53
  %v61 = vpack.c.b16 %v56, %v55
  %v62 = vpack.c.b16 %v58, %v57
  %v65 = vunpack.c.l.b16 %v34
  %v66 = vunpack.c.l.b16 %v35
  %v67 = vpack.c.b16 %v66, %v65
  %vm69 = vcmask 130048
  %v71 = vsel %vm69, %v59, 0
  %v74 = vsel %vm69, %v60, 0
  %v77 = vsel %vm69, %v61, 0
  %v80 = vsel %vm69, %v62, 0
  %82 = vmatprep.subr.bf16.mxu0 0
  %83 = vmatpush1.bf16.msra.mxu0 %v67
  %84 = vmatprep.subr.bf16.mxu0 0
  %85 = vmatpush1.bf16.msra.mxu0 0
  %86 = vmatprep.subr.bf16.mxu0 0
  %87 = vmatpush1.bf16.msra.mxu0 0
  %88 = vmatprep.subr.bf16.mxu0 0
  %89 = vmatpush1.bf16.msra.mxu0 0
  %90 = vmatprep.subr.bf16.mxu0 0
  %91 = vmatpush1.bf16.msra.mxu0 0
  %92 = vmatprep.subr.bf16.mxu0 0
  %93 = vmatpush1.bf16.msra.mxu0 0
  %94 = vmatprep.subr.bf16.mxu0 0
  %95 = vmatpush1.bf16.msra.mxu0 0
  %96 = vmatprep.subr.bf16.mxu0 0
  %97 = vmatpush1.bf16.msra.mxu0 0
  %98 = vmatprep.subr.bf16.mxu0 0
  %99 = vmatpush1.bf16.msra.mxu0 0
  %100 = vmatprep.subr.bf16.mxu0 0
  %101 = vmatpush1.bf16.msra.mxu0 0
  %102 = vmatprep.subr.bf16.mxu0 0
  %103 = vmatpush1.bf16.msra.mxu0 0
  %104 = vmatprep.subr.bf16.mxu0 0
  %105 = vmatpush1.bf16.msra.mxu0 0
  %106 = vmatprep.subr.bf16.mxu0 0
  %107 = vmatpush1.bf16.msra.mxu0 0
  %108 = vmatprep.subr.bf16.mxu0 0
  %109 = vmatpush1.bf16.msra.mxu0 0
  %110 = vmatprep.subr.bf16.mxu0 0
  %111 = vmatpush1.bf16.msra.mxu0 0
  %112 = vmatprep.subr.bf16.mxu0 0
  %113 = vmatpush1.bf16.msra.mxu0 0
  %114 = vmatprep.mubr.bf16.mxu0 0
  %115 = vmatmul.mubr.bf16.gmra.mrb[0].mxu0 %v71
  %v116 = vpop.f32.mrb[0].mxu0
  %v117 = vadd.f32 %v41, %v116
  %v118 = vpop.f32.mrb[0].mxu0
  %v119 = vpop.f32.mrb[0].mxu0
  %v120 = vadd.f32 %v41, %v119
  %v121 = vpop.f32.mrb[0].mxu0
  %122 = vmatprep.mubr.bf16.mxu0 0
  %123 = vmatmul.mubr.bf16.gmra.mrb[0].mxu0 %v74
  %v124 = vpop.f32.mrb[0].mxu0
  %v125 = vadd.f32 %v41, %v124
  %v126 = vpop.f32.mrb[0].mxu0
  %v127 = vpop.f32.mrb[0].mxu0
  %v128 = vadd.f32 %v41, %v127
  %v129 = vpop.f32.mrb[0].mxu0
  %130 = vmatprep.mubr.bf16.mxu0 0
  %131 = vmatmul.mubr.bf16.gmra.mrb[0].mxu0 %v77
  %v132 = vpop.f32.mrb[0].mxu0
  %v133 = vadd.f32 %v41, %v132
  %v134 = vpop.f32.mrb[0].mxu0
  %v135 = vpop.f32.mrb[0].mxu0
  %v136 = vadd.f32 %v41, %v135
  %v137 = vpop.f32.mrb[0].mxu0
  %138 = vmatprep.mubr.bf16.mxu0 0
  %139 = vmatmul.mubr.bf16.gmra.mrb[0].mxu0 %v80
  %v140 = vpop.f32.mrb[0].mxu0
  %v141 = vadd.f32 %v41, %v140
  %v142 = vpop.f32.mrb[0].mxu0
  %v143 = vpop.f32.mrb[0].mxu0
  %v144 = vadd.f32 %v41, %v143
  %v145 = vpop.f32.mrb[0].mxu0
  %146 = vdwg.mxu0
  %147 = vst [vmem:[#allocation2] sm:$0xff] %v117
  %148 = vst [vmem:[#allocation2 + $0x8] sm:$0xff] %v120
  %149 = vst [vmem:[#allocation2 + $0x10] sm:$0xff] %v125
  %150 = vst [vmem:[#allocation2 + $0x18] sm:$0xff] %v128
  %151 = vst [vmem:[#allocation2 + $0x20] sm:$0xff] %v133
  %152 = vst [vmem:[#allocation2 + $0x28] sm:$0xff] %v136
  %153 = vst [vmem:[#allocation2 + $0x30] sm:$0xff] %v141
  %154 = vst [vmem:[#allocation2 + $0x38] sm:$0xff] %v144
  %v155 = vld [vmem:[%s2] sm:$0xf]
  %v156 = vld [vmem:[%s2 + $0x4] sm:$0xf]
  %v157 = vld [vmem:[%s2 + $0x8] sm:$0xf]
  %v158 = vld [vmem:[%s2 + $0xc] sm:$0xf]
  %v159 = vld [vmem:[%s4] sm:$0x1]
  %v160 = vld [vmem:[#allocation2] sm:$0xff]
  %v165 = vunpack.c.l.b16 %v155
  %v166 = vunpack.c.l.b16 %v156
  %v167 = vunpack.c.l.b16 %v157
  %v168 = vunpack.c.l.b16 %v158
  %v169 = vpack.c.b16 %v166, %v165
  %v170 = vpack.c.b16 %v168, %v167
  %vm173 = vcmask 261120
  %v175 = vsel %vm173, 0, 0
  %177 = vmatprep.subr.bf16.mxu0 0
  %178 = vmatpush1.bf16.msra.mxu0 %v169
  %179 = vmatprep.subr.bf16.mxu0 0
  %180 = vmatpush1.bf16.msra.mxu0 %v170
  %181 = vmatprep.subr.bf16.mxu0 0
  %182 = vmatpush1.bf16.msra.mxu0 0
  %183 = vmatprep.subr.bf16.mxu0 0
  %184 = vmatpush1.bf16.msra.mxu0 0
  %185 = vmatprep.subr.bf16.mxu0 0
  %186 = vmatpush1.bf16.msra.mxu0 0
  %187 = vmatprep.subr.bf16.mxu0 0
  %188 = vmatpush1.bf16.msra.mxu0 0
  %189 = vmatprep.subr.bf16.mxu0 0
  %190 = vmatpush1.bf16.msra.mxu0 0
  %191 = vmatprep.subr.bf16.mxu0 0
  %192 = vmatpush1.bf16.msra.mxu0 0
  %193 = vmatprep.subr.bf16.mxu0 0
  %194 = vmatpush1.bf16.msra.mxu0 0
  %195 = vmatprep.subr.bf16.mxu0 0
  %196 = vmatpush1.bf16.msra.mxu0 0
  %197 = vmatprep.subr.bf16.mxu0 0
  %198 = vmatpush1.bf16.msra.mxu0 0
  %199 = vmatprep.subr.bf16.mxu0 0
  %200 = vmatpush1.bf16.msra.mxu0 0
  %201 = vmatprep.subr.bf16.mxu0 0
  %202 = vmatpush1.bf16.msra.mxu0 0
  %203 = vmatprep.subr.bf16.mxu0 0
  %204 = vmatpush1.bf16.msra.mxu0 0
  %205 = vmatprep.subr.bf16.mxu0 0
  %206 = vmatpush1.bf16.msra.mxu0 0
  %207 = vmatprep.subr.bf16.mxu0 0
  %208 = vmatpush1.bf16.msra.mxu0 0
  %209 = vmatprep.mubr.bf16.mxu0 0
  %210 = vmatmul.mubr.bf16.gmra.mrb[0].mxu0 %v175
  %v211 = vpop.f32.mrb[0].mxu0
  %v212 = vadd.f32 0.0, %v211
  %v213 = vpop.f32.mrb[0].mxu0
  %v214 = vpop.f32.mrb[0].mxu0
  %v215 = vpop.f32.mrb[0].mxu0
  %216 = vdwg.mxu0
  %v217 = vadd.f32 %v160, %v212
  %v218 = vxor.u32 %v217, 2147483648
  %v219 = vmul.f32 %v218, 1.442695
  %v220 = vpow.pop %v219
  %v221 = vadd.f32 %v220, 1.0
  %v222 = vrcp.pop %v221
  %v223 = vmul.f32 1.0, %v222
  %v224 = vtanh.pop %v217
  %v225 = vmul.f32 %v223, 0.0
  %227 = vrot.lane.b32.xlu0 %v224, 64
  %v228 = vpop.permute.xlu0 %227
  %v230 = vmul.f32 %v223, %v228
  %232 = vrot.lane.b32.xlu0 %v230, 32
  %v233 = vpop.permute.xlu0 %232
  %v235 = vadd.f32 %v225, %v233
  %v236 = vtanh.pop %v235
  %238 = vrot.lane.b32.xlu0 %v236, 64
  %v239 = vpop.permute.xlu0 %238
  %v241 = vmul.f32 %v223, %v239
  %s242 = scalar_lea.vmem [#allocation2], 8
  %v243 = vld [vmem:[%s242] sm:$0xff]
  %v244 = vpack.c.bf16 %v241, %v241
  %246 = vrot.lane.b32.xlu0 %v244, 32
  %v247 = vpop.permute.xlu0 %246
  %v249 = vsel %vm173, %v247, 0
  %251 = vmatprep.subr.bf16.mxu0 0
  %252 = vmatpush1.bf16.msra.mxu0 %v169
  %253 = vmatprep.subr.bf16.mxu0 0
  %254 = vmatpush1.bf16.msra.mxu0 %v170
  %255 = vmatprep.subr.bf16.mxu0 0
  %256 = vmatpush1.bf16.msra.mxu0 0
  %257 = vmatprep.subr.bf16.mxu0 0
  %258 = vmatpush1.bf16.msra.mxu0 0
  %259 = vmatprep.subr.bf16.mxu0 0
  %260 = vmatpush1.bf16.msra.mxu0 0
  %261 = vmatprep.subr.bf16.mxu0 0
  %262 = vmatpush1.bf16.msra.mxu0 0
  %263 = vmatprep.subr.bf16.mxu0 0
  %264 = vmatpush1.bf16.msra.mxu0 0
  %265 = vmatprep.subr.bf16.mxu0 0
  %266 = vmatpush1.bf16.msra.mxu0 0
  %267 = vmatprep.subr.bf16.mxu0 0
  %268 = vmatpush1.bf16.msra.mxu0 0
  %269 = vmatprep.subr.bf16.mxu0 0
  %270 = vmatpush1.bf16.msra.mxu0 0
  %271 = vmatprep.subr.bf16.mxu0 0
  %272 = vmatpush1.bf16.msra.mxu0 0
  %273 = vmatprep.subr.bf16.mxu0 0
  %274 = vmatpush1.bf16.msra.mxu0 0
  %275 = vmatprep.subr.bf16.mxu0 0
  %276 = vmatpush1.bf16.msra.mxu0 0
  %277 = vmatprep.subr.bf16.mxu0 0
  %278 = vmatpush1.bf16.msra.mxu0 0
  %279 = vmatprep.subr.bf16.mxu0 0
  %280 = vmatpush1.bf16.msra.mxu0 0
  %281 = vmatprep.subr.bf16.mxu0 0
  %282 = vmatpush1.bf16.msra.mxu0 0
  %283 = vmatprep.mubr.bf16.mxu0 0
  %284 = vmatmul.mubr.bf16.gmra.mrb[0].mxu0 %v249
  %v285 = vpop.f32.mrb[0].mxu0
  %v286 = vadd.f32 0.0, %v285
  %v287 = vpop.f32.mrb[0].mxu0
  %v288 = vpop.f32.mrb[0].mxu0
  %v289 = vpop.f32.mrb[0].mxu0
  %290 = vdwg.mxu0
  %v291 = vadd.f32 %v243, %v286
  %v292 = vxor.u32 %v291, 2147483648
  %v293 = vmul.f32 %v292, 1.442695
  %v294 = vpow.pop %v293
  %v295 = vadd.f32 %v294, 1.0
  %v296 = vrcp.pop %v295
  %v297 = vmul.f32 1.0, %v296
  %v298 = vtanh.pop %v291
  %v299 = vmul.f32 %v297, %v235
  %301 = vrot.lane.b32.xlu0 %v298, 64
  %v302 = vpop.permute.xlu0 %301
  %v304 = vmul.f32 %v297, %v302
  %306 = vrot.lane.b32.xlu0 %v304, 32
  %v307 = vpop.permute.xlu0 %306
  %v309 = vadd.f32 %v299, %v307
  %v310 = vtanh.pop %v309
  %312 = vrot.lane.b32.xlu0 %v310, 64
  %v313 = vpop.permute.xlu0 %312
  %v315 = vmul.f32 %v297, %v313
  %s316 = scalar_lea.vmem [#allocation2], 16
  %v317 = vld [vmem:[%s316] sm:$0xff]
  %v318 = vpack.c.bf16 %v315, %v315
  %320 = vrot.lane.b32.xlu0 %v318, 32
  %v321 = vpop.permute.xlu0 %320
  %v323 = vsel %vm173, %v321, 0
  %325 = vmatprep.subr.bf16.mxu0 0
  %326 = vmatpush1.bf16.msra.mxu0 %v169
  %327 = vmatprep.subr.bf16.mxu0 0
  %328 = vmatpush1.bf16.msra.mxu0 %v170
  %329 = vmatprep.subr.bf16.mxu0 0
  %330 = vmatpush1.bf16.msra.mxu0 0
  %331 = vmatprep.subr.bf16.mxu0 0
  %332 = vmatpush1.bf16.msra.mxu0 0
  %333 = vmatprep.subr.bf16.mxu0 0
  %334 = vmatpush1.bf16.msra.mxu0 0
  %335 = vmatprep.subr.bf16.mxu0 0
  %336 = vmatpush1.bf16.msra.mxu0 0
  %337 = vmatprep.subr.bf16.mxu0 0
  %338 = vmatpush1.bf16.msra.mxu0 0
  %339 = vmatprep.subr.bf16.mxu0 0
  %340 = vmatpush1.bf16.msra.mxu0 0
  %341 = vmatprep.subr.bf16.mxu0 0
  %342 = vmatpush1.bf16.msra.mxu0 0
  %343 = vmatprep.subr.bf16.mxu0 0
  %344 = vmatpush1.bf16.msra.mxu0 0
  %345 = vmatprep.subr.bf16.mxu0 0
  %346 = vmatpush1.bf16.msra.mxu0 0
  %347 = vmatprep.subr.bf16.mxu0 0
  %348 = vmatpush1.bf16.msra.mxu0 0
  %349 = vmatprep.subr.bf16.mxu0 0
  %350 = vmatpush1.bf16.msra.mxu0 0
  %351 = vmatprep.subr.bf16.mxu0 0
  %352 = vmatpush1.bf16.msra.mxu0 0
  %353 = vmatprep.subr.bf16.mxu0 0
  %354 = vmatpush1.bf16.msra.mxu0 0
  %355 = vmatprep.subr.bf16.mxu0 0
  %356 = vmatpush1.bf16.msra.mxu0 0
  %357 = vmatprep.mubr.bf16.mxu0 0
  %358 = vmatmul.mubr.bf16.gmra.mrb[0].mxu0 %v323
  %v359 = vpop.f32.mrb[0].mxu0
  %v360 = vadd.f32 0.0, %v359
  %v361 = vpop.f32.mrb[0].mxu0
  %v362 = vpop.f32.mrb[0].mxu0
  %v363 = vpop.f32.mrb[0].mxu0
  %364 = vdwg.mxu0
  %v365 = vadd.f32 %v317, %v360
  %v366 = vxor.u32 %v365, 2147483648
  %v367 = vmul.f32 %v366, 1.442695
  %v368 = vpow.pop %v367
  %v369 = vadd.f32 %v368, 1.0
  %v370 = vrcp.pop %v369
  %v371 = vmul.f32 1.0, %v370
  %v372 = vtanh.pop %v365
  %v373 = vmul.f32 %v371, %v309
  %375 = vrot.lane.b32.xlu0 %v372, 64
  %v376 = vpop.permute.xlu0 %375
  %v378 = vmul.f32 %v371, %v376
  %380 = vrot.lane.b32.xlu0 %v378, 32
  %v381 = vpop.permute.xlu0 %380
  %v383 = vadd.f32 %v373, %v381
  %v384 = vtanh.pop %v383
  %386 = vrot.lane.b32.xlu0 %v384, 64
  %v387 = vpop.permute.xlu0 %386
  %v389 = vmul.f32 %v371, %v387
  %s390 = scalar_lea.vmem [#allocation2], 24
  %v391 = vld [vmem:[%s390] sm:$0xff]
  %v392 = vpack.c.bf16 %v389, %v389
  %394 = vrot.lane.b32.xlu0 %v392, 32
  %v395 = vpop.permute.xlu0 %394
  %v397 = vsel %vm173, %v395, 0
  %399 = vmatprep.subr.bf16.mxu0 0
  %400 = vmatpush1.bf16.msra.mxu0 %v169
  %401 = vmatprep.subr.bf16.mxu0 0
  %402 = vmatpush1.bf16.msra.mxu0 %v170
  %403 = vmatprep.subr.bf16.mxu0 0
  %404 = vmatpush1.bf16.msra.mxu0 0
  %405 = vmatprep.subr.bf16.mxu0 0
  %406 = vmatpush1.bf16.msra.mxu0 0
  %407 = vmatprep.subr.bf16.mxu0 0
  %408 = vmatpush1.bf16.msra.mxu0 0
  %409 = vmatprep.subr.bf16.mxu0 0
  %410 = vmatpush1.bf16.msra.mxu0 0
  %411 = vmatprep.subr.bf16.mxu0 0
  %412 = vmatpush1.bf16.msra.mxu0 0
  %413 = vmatprep.subr.bf16.mxu0 0
  %414 = vmatpush1.bf16.msra.mxu0 0
  %415 = vmatprep.subr.bf16.mxu0 0
  %416 = vmatpush1.bf16.msra.mxu0 0
  %417 = vmatprep.subr.bf16.mxu0 0
  %418 = vmatpush1.bf16.msra.mxu0 0
  %419 = vmatprep.subr.bf16.mxu0 0
  %420 = vmatpush1.bf16.msra.mxu0 0
  %421 = vmatprep.subr.bf16.mxu0 0
  %422 = vmatpush1.bf16.msra.mxu0 0
  %423 = vmatprep.subr.bf16.mxu0 0
  %424 = vmatpush1.bf16.msra.mxu0 0
  %425 = vmatprep.subr.bf16.mxu0 0
  %426 = vmatpush1.bf16.msra.mxu0 0
  %427 = vmatprep.subr.bf16.mxu0 0
  %428 = vmatpush1.bf16.msra.mxu0 0
  %429 = vmatprep.subr.bf16.mxu0 0
  %430 = vmatpush1.bf16.msra.mxu0 0
  %431 = vmatprep.mubr.bf16.mxu0 0
  %432 = vmatmul.mubr.bf16.gmra.mrb[0].mxu0 %v397
  %v433 = vpop.f32.mrb[0].mxu0
  %v434 = vadd.f32 0.0, %v433
  %v435 = vpop.f32.mrb[0].mxu0
  %v436 = vpop.f32.mrb[0].mxu0
  %v437 = vpop.f32.mrb[0].mxu0
  %438 = vdwg.mxu0
  %v439 = vadd.f32 %v391, %v434
  %v440 = vxor.u32 %v439, 2147483648
  %v441 = vmul.f32 %v440, 1.442695
  %v442 = vpow.pop %v441
  %v443 = vadd.f32 %v442, 1.0
  %v444 = vrcp.pop %v443
  %v445 = vmul.f32 1.0, %v444
  %v446 = vtanh.pop %v439
  %v447 = vmul.f32 %v445, %v383
  %449 = vrot.lane.b32.xlu0 %v446, 64
  %v450 = vpop.permute.xlu0 %449
  %v452 = vmul.f32 %v445, %v450
  %454 = vrot.lane.b32.xlu0 %v452, 32
  %v455 = vpop.permute.xlu0 %454
  %v457 = vadd.f32 %v447, %v455
  %v458 = vtanh.pop %v457
  %460 = vrot.lane.b32.xlu0 %v458, 64
  %v461 = vpop.permute.xlu0 %460
  %v463 = vmul.f32 %v445, %v461
  %s464 = scalar_lea.vmem [#allocation2], 32
  %v465 = vld [vmem:[%s464] sm:$0xff]
  %v466 = vpack.c.bf16 %v463, %v463
  %468 = vrot.lane.b32.xlu0 %v466, 32
  %v469 = vpop.permute.xlu0 %468
  %v471 = vsel %vm173, %v469, 0
  %473 = vmatprep.subr.bf16.mxu0 0
  %474 = vmatpush1.bf16.msra.mxu0 %v169
  %475 = vmatprep.subr.bf16.mxu0 0
  %476 = vmatpush1.bf16.msra.mxu0 %v170
  %477 = vmatprep.subr.bf16.mxu0 0
  %478 = vmatpush1.bf16.msra.mxu0 0
  %479 = vmatprep.subr.bf16.mxu0 0
  %480 = vmatpush1.bf16.msra.mxu0 0
  %481 = vmatprep.subr.bf16.mxu0 0
  %482 = vmatpush1.bf16.msra.mxu0 0
  %483 = vmatprep.subr.bf16.mxu0 0
  %484 = vmatpush1.bf16.msra.mxu0 0
  %485 = vmatprep.subr.bf16.mxu0 0
  %486 = vmatpush1.bf16.msra.mxu0 0
  %487 = vmatprep.subr.bf16.mxu0 0
  %488 = vmatpush1.bf16.msra.mxu0 0
  %489 = vmatprep.subr.bf16.mxu0 0
  %490 = vmatpush1.bf16.msra.mxu0 0
  %491 = vmatprep.subr.bf16.mxu0 0
  %492 = vmatpush1.bf16.msra.mxu0 0
  %493 = vmatprep.subr.bf16.mxu0 0
  %494 = vmatpush1.bf16.msra.mxu0 0
  %495 = vmatprep.subr.bf16.mxu0 0
  %496 = vmatpush1.bf16.msra.mxu0 0
  %497 = vmatprep.subr.bf16.mxu0 0
  %498 = vmatpush1.bf16.msra.mxu0 0
  %499 = vmatprep.subr.bf16.mxu0 0
  %500 = vmatpush1.bf16.msra.mxu0 0
  %501 = vmatprep.subr.bf16.mxu0 0
  %502 = vmatpush1.bf16.msra.mxu0 0
  %503 = vmatprep.subr.bf16.mxu0 0
  %504 = vmatpush1.bf16.msra.mxu0 0
  %505 = vmatprep.mubr.bf16.mxu0 0
  %506 = vmatmul.mubr.bf16.gmra.mrb[0].mxu0 %v471
  %v507 = vpop.f32.mrb[0].mxu0
  %v508 = vadd.f32 0.0, %v507
  %v509 = vpop.f32.mrb[0].mxu0
  %v510 = vpop.f32.mrb[0].mxu0
  %v511 = vpop.f32.mrb[0].mxu0
  %512 = vdwg.mxu0
  %v513 = vadd.f32 %v465, %v508
  %v514 = vxor.u32 %v513, 2147483648
  %v515 = vmul.f32 %v514, 1.442695
  %v516 = vpow.pop %v515
  %v517 = vadd.f32 %v516, 1.0
  %v518 = vrcp.pop %v517
  %v519 = vmul.f32 1.0, %v518
  %v520 = vtanh.pop %v513
  %v521 = vmul.f32 %v519, %v457
  %523 = vrot.lane.b32.xlu0 %v520, 64
  %v524 = vpop.permute.xlu0 %523
  %v526 = vmul.f32 %v519, %v524
  %528 = vrot.lane.b32.xlu0 %v526, 32
  %v529 = vpop.permute.xlu0 %528
  %v531 = vadd.f32 %v521, %v529
  %v532 = vtanh.pop %v531
  %534 = vrot.lane.b32.xlu0 %v532, 64
  %v535 = vpop.permute.xlu0 %534
  %v537 = vmul.f32 %v519, %v535
  %s538 = scalar_lea.vmem [#allocation2], 40
  %v539 = vld [vmem:[%s538] sm:$0xff]
  %v540 = vpack.c.bf16 %v537, %v537
  %542 = vrot.lane.b32.xlu0 %v540, 32
  %v543 = vpop.permute.xlu0 %542
  %v545 = vsel %vm173, %v543, 0
  %547 = vmatprep.subr.bf16.mxu0 0
  %548 = vmatpush1.bf16.msra.mxu0 %v169
  %549 = vmatprep.subr.bf16.mxu0 0
  %550 = vmatpush1.bf16.msra.mxu0 %v170
  %551 = vmatprep.subr.bf16.mxu0 0
  %552 = vmatpush1.bf16.msra.mxu0 0
  %553 = vmatprep.subr.bf16.mxu0 0
  %554 = vmatpush1.bf16.msra.mxu0 0
  %555 = vmatprep.subr.bf16.mxu0 0
  %556 = vmatpush1.bf16.msra.mxu0 0
  %557 = vmatprep.subr.bf16.mxu0 0
  %558 = vmatpush1.bf16.msra.mxu0 0
  %559 = vmatprep.subr.bf16.mxu0 0
  %560 = vmatpush1.bf16.msra.mxu0 0
  %561 = vmatprep.subr.bf16.mxu0 0
  %562 = vmatpush1.bf16.msra.mxu0 0
  %563 = vmatprep.subr.bf16.mxu0 0
  %564 = vmatpush1.bf16.msra.mxu0 0
  %565 = vmatprep.subr.bf16.mxu0 0
  %566 = vmatpush1.bf16.msra.mxu0 0
  %567 = vmatprep.subr.bf16.mxu0 0
  %568 = vmatpush1.bf16.msra.mxu0 0
  %569 = vmatprep.subr.bf16.mxu0 0
  %570 = vmatpush1.bf16.msra.mxu0 0
  %571 = vmatprep.subr.bf16.mxu0 0
  %572 = vmatpush1.bf16.msra.mxu0 0
  %573 = vmatprep.subr.bf16.mxu0 0
  %574 = vmatpush1.bf16.msra.mxu0 0
  %575 = vmatprep.subr.bf16.mxu0 0
  %576 = vmatpush1.bf16.msra.mxu0 0
  %577 = vmatprep.subr.bf16.mxu0 0
  %578 = vmatpush1.bf16.msra.mxu0 0
  %579 = vmatprep.mubr.bf16.mxu0 0
  %580 = vmatmul.mubr.bf16.gmra.mrb[0].mxu0 %v545
  %v581 = vpop.f32.mrb[0].mxu0
  %v582 = vadd.f32 0.0, %v581
  %v583 = vpop.f32.mrb[0].mxu0
  %v584 = vpop.f32.mrb[0].mxu0
  %v585 = vpop.f32.mrb[0].mxu0
  %586 = vdwg.mxu0
  %v587 = vadd.f32 %v539, %v582
  %v588 = vxor.u32 %v587, 2147483648
  %v589 = vmul.f32 %v588, 1.442695
  %v590 = vpow.pop %v589
  %v591 = vadd.f32 %v590, 1.0
  %v592 = vrcp.pop %v591
  %v593 = vmul.f32 1.0, %v592
  %v594 = vtanh.pop %v587
  %v595 = vmul.f32 %v593, %v531
  %597 = vrot.lane.b32.xlu0 %v594, 64
  %v598 = vpop.permute.xlu0 %597
  %v600 = vmul.f32 %v593, %v598
  %602 = vrot.lane.b32.xlu0 %v600, 32
  %v603 = vpop.permute.xlu0 %602
  %v605 = vadd.f32 %v595, %v603
  %v606 = vtanh.pop %v605
  %608 = vrot.lane.b32.xlu0 %v606, 64
  %v609 = vpop.permute.xlu0 %608
  %v611 = vmul.f32 %v593, %v609
  %s612 = scalar_lea.vmem [#allocation2], 48
  %v613 = vld [vmem:[%s612] sm:$0xff]
  %v614 = vpack.c.bf16 %v611, %v611
  %616 = vrot.lane.b32.xlu0 %v614, 32
  %v617 = vpop.permute.xlu0 %616
  %v619 = vsel %vm173, %v617, 0
  %621 = vmatprep.subr.bf16.mxu0 0
  %622 = vmatpush1.bf16.msra.mxu0 %v169
  %623 = vmatprep.subr.bf16.mxu0 0
  %624 = vmatpush1.bf16.msra.mxu0 %v170
  %625 = vmatprep.subr.bf16.mxu0 0
  %626 = vmatpush1.bf16.msra.mxu0 0
  %627 = vmatprep.subr.bf16.mxu0 0
  %628 = vmatpush1.bf16.msra.mxu0 0
  %629 = vmatprep.subr.bf16.mxu0 0
  %630 = vmatpush1.bf16.msra.mxu0 0
  %631 = vmatprep.subr.bf16.mxu0 0
  %632 = vmatpush1.bf16.msra.mxu0 0
  %633 = vmatprep.subr.bf16.mxu0 0
  %634 = vmatpush1.bf16.msra.mxu0 0
  %635 = vmatprep.subr.bf16.mxu0 0
  %636 = vmatpush1.bf16.msra.mxu0 0
  %637 = vmatprep.subr.bf16.mxu0 0
  %638 = vmatpush1.bf16.msra.mxu0 0
  %639 = vmatprep.subr.bf16.mxu0 0
  %640 = vmatpush1.bf16.msra.mxu0 0
  %641 = vmatprep.subr.bf16.mxu0 0
  %642 = vmatpush1.bf16.msra.mxu0 0
  %643 = vmatprep.subr.bf16.mxu0 0
  %644 = vmatpush1.bf16.msra.mxu0 0
  %645 = vmatprep.subr.bf16.mxu0 0
  %646 = vmatpush1.bf16.msra.mxu0 0
  %647 = vmatprep.subr.bf16.mxu0 0
  %648 = vmatpush1.bf16.msra.mxu0 0
  %649 = vmatprep.subr.bf16.mxu0 0
  %650 = vmatpush1.bf16.msra.mxu0 0
  %651 = vmatprep.subr.bf16.mxu0 0
  %652 = vmatpush1.bf16.msra.mxu0 0
  %653 = vmatprep.mubr.bf16.mxu0 0
  %654 = vmatmul.mubr.bf16.gmra.mrb[0].mxu0 %v619
  %v655 = vpop.f32.mrb[0].mxu0
  %v656 = vadd.f32 0.0, %v655
  %v657 = vpop.f32.mrb[0].mxu0
  %v658 = vpop.f32.mrb[0].mxu0
  %v659 = vpop.f32.mrb[0].mxu0
  %660 = vdwg.mxu0
  %v661 = vadd.f32 %v613, %v656
  %v662 = vxor.u32 %v661, 2147483648
  %v663 = vmul.f32 %v662, 1.442695
  %v664 = vpow.pop %v663
  %v665 = vadd.f32 %v664, 1.0
  %v666 = vrcp.pop %v665
  %v667 = vmul.f32 1.0, %v666
  %v668 = vtanh.pop %v661
  %v669 = vmul.f32 %v667, %v605
  %671 = vrot.lane.b32.xlu0 %v668, 64
  %v672 = vpop.permute.xlu0 %671
  %v674 = vmul.f32 %v667, %v672
  %676 = vrot.lane.b32.xlu0 %v674, 32
  %v677 = vpop.permute.xlu0 %676
  %v679 = vadd.f32 %v669, %v677
  %v680 = vtanh.pop %v679
  %682 = vrot.lane.b32.xlu0 %v680, 64
  %v683 = vpop.permute.xlu0 %682
  %v685 = vmul.f32 %v667, %v683
  %s686 = scalar_lea.vmem [#allocation2], 56
  %v687 = vld [vmem:[%s686] sm:$0xff]
  %v688 = vpack.c.bf16 %v685, %v685
  %690 = vrot.lane.b32.xlu0 %v688, 32
  %v691 = vpop.permute.xlu0 %690
  %v693 = vsel %vm173, %v691, 0
  %695 = vmatprep.subr.bf16.mxu0 0
  %696 = vmatpush1.bf16.msra.mxu0 %v169
  %697 = vmatprep.subr.bf16.mxu0 0
  %698 = vmatpush1.bf16.msra.mxu0 %v170
  %699 = vmatprep.subr.bf16.mxu0 0
  %700 = vmatpush1.bf16.msra.mxu0 0
  %701 = vmatprep.subr.bf16.mxu0 0
  %702 = vmatpush1.bf16.msra.mxu0 0
  %703 = vmatprep.subr.bf16.mxu0 0
  %704 = vmatpush1.bf16.msra.mxu0 0
  %705 = vmatprep.subr.bf16.mxu0 0
  %706 = vmatpush1.bf16.msra.mxu0 0
  %707 = vmatprep.subr.bf16.mxu0 0
  %708 = vmatpush1.bf16.msra.mxu0 0
  %709 = vmatprep.subr.bf16.mxu0 0
  %710 = vmatpush1.bf16.msra.mxu0 0
  %711 = vmatprep.subr.bf16.mxu0 0
  %712 = vmatpush1.bf16.msra.mxu0 0
  %713 = vmatprep.subr.bf16.mxu0 0
  %714 = vmatpush1.bf16.msra.mxu0 0
  %715 = vmatprep.subr.bf16.mxu0 0
  %716 = vmatpush1.bf16.msra.mxu0 0
  %717 = vmatprep.subr.bf16.mxu0 0
  %718 = vmatpush1.bf16.msra.mxu0 0
  %719 = vmatprep.subr.bf16.mxu0 0
  %720 = vmatpush1.bf16.msra.mxu0 0
  %721 = vmatprep.subr.bf16.mxu0 0
  %722 = vmatpush1.bf16.msra.mxu0 0
  %723 = vmatprep.subr.bf16.mxu0 0
  %724 = vmatpush1.bf16.msra.mxu0 0
  %725 = vmatprep.subr.bf16.mxu0 0
  %726 = vmatpush1.bf16.msra.mxu0 0
  %727 = vmatprep.mubr.bf16.mxu0 0
  %728 = vmatmul.mubr.bf16.gmra.mrb[0].mxu0 %v693
  %v729 = vpop.f32.mrb[0].mxu0
  %v730 = vadd.f32 0.0, %v729
  %v731 = vpop.f32.mrb[0].mxu0
  %v732 = vpop.f32.mrb[0].mxu0
  %v733 = vpop.f32.mrb[0].mxu0
  %734 = vdwg.mxu0
  %v735 = vadd.f32 %v687, %v730
  %v736 = vxor.u32 %v735, 2147483648
  %v737 = vmul.f32 %v736, 1.442695
  %v738 = vpow.pop %v737
  %v739 = vadd.f32 %v738, 1.0
  %v740 = vrcp.pop %v739
  %v741 = vmul.f32 1.0, %v740
  %v742 = vtanh.pop %v735
  %v743 = vmul.f32 %v741, %v679
  %745 = vrot.lane.b32.xlu0 %v742, 64
  %v746 = vpop.permute.xlu0 %745
  %v748 = vmul.f32 %v741, %v746
  %750 = vrot.lane.b32.xlu0 %v748, 32
  %v751 = vpop.permute.xlu0 %750
  %v753 = vadd.f32 %v743, %v751
  %v754 = vtanh.pop %v753
  %756 = vrot.lane.b32.xlu0 %v754, 64
  %v757 = vpop.permute.xlu0 %756
  %v759 = vmul.f32 %v741, %v757
  %v761 = vlaneseq
  %v762 = vshrl.u32 %v761, 7
  %v763 = vsub.s32 0, %v762
  %v764 = vrot.slane %v159, %v763
  %765 = vrot.lane.b32.xlu0 %v764, 96
  %v766 = vpop.permute.xlu0 %765
  %v768 = vmul.f32 %v759, %v766
  %770 = vrot.lane.b32.xlu0 %v768, 32
  %v771 = vpop.permute.xlu0 %770
  %v773 = vsel %vm173, %v771, 0.0
  %774 = vadd.xlane.f32.xlu0 %v773
  %v775 = vpop.xlane.xlu0 %774
  %v777 = vmul.f32 %v753, %v764
  %779 = vrot.lane.b32.xlu0 %v777, 96
  %v780 = vpop.permute.xlu0 %779
  %v782 = vsel %vm173, %v780, 0.0
  %783 = vadd.xlane.f32.xlu0 %v782
  %v784 = vpop.xlane.xlu0 %783
  %v785 = vadd.f32 %v775, %v784
  %v786 = vld [vmem:[#allocation3] sm:$0x1]
  %v788 = vlaneseq
  %v789 = vshrl.u32 %v788, 7
  %v790 = vsub.s32 0, %v789
  %v791 = vrot.slane %v786, %v790
  %v793 = vadd.f32 %v785, %v791
  %vm794 = vcmask 7168
  %795 = vst.msk [vmem:[%s6] sm:$0xff] %vm794, %v793
  // Predicated region
  $region26: #{tpu_custom_call.1} parent=0 // pred_check
    _
  $region27: #{tpu_custom_call.1} parent=0 // pred_check_branch
    %797 = sbr.rel (0) target = $region29
  $region28: #{tpu_custom_call.1} parent=0 // pred_region
    _
  $region29: #{tpu_custom_call.1} parent=0 // pred_fallthru
    _
  // Predicated region
  $region30: #{tpu_custom_call.1} parent=0 // pred_check
    _
  $region31: #{tpu_custom_call.1} parent=0 // pred_check_branch
    %799 = sbr.rel (0) target = $region33
  $region32: #{tpu_custom_call.1} parent=0 // pred_region
    _
  $region33: #{tpu_custom_call.1} parent=0 // pred_fallthru
    _

</llo_original>
